<compile_context>
chip_gen: v6e
topology: v6e:2x2x1
jax: 0.10.0
libtpu: 0.0.40
codegen_flags: <defaults>
</compile_context>

<pallas_src>
import functools

import jax
import jax.numpy as jnp
from jax import lax
from jax.experimental import pallas as pl
from jax.experimental.pallas import tpu as pltpu


def _two_tower_kernel(n_user_rows, uid_ref, mid_ref, wf_ref, b1_ref, w2_ref,
                      b2_ref, out_ref):
    # uid_ref/mid_ref: (1, TB) int32            batch-tile of ids
    # wf_ref: (H, U+M) bf16                     fused fc1 @ [user_emb; movie_emb]^T
    # b1_ref: (H, 1) f32   w2_ref: (1, H) bf16  b2_ref: (1, 1) f32
    # out_ref: (1, TB) f32                      lane-dense logits
    tb = uid_ref.shape[1]
    n_rows = wf_ref.shape[1]

    uid = uid_ref[...]                               # (1, TB)
    mid = mid_ref[...] + n_user_rows                 # offset into fused-table rows

    # Combined two-hot (U+M, TB): selects (and sums) the user column and the
    # movie column of the fused table with ONE K=(U+M) bf16 MXU matmul.
    # Compare is int32 on the VPU; only the final cast emits bf16 (v5e has no
    # bf16 VALU arithmetic).  Out-of-range ids yield an all-zero column
    # (PyTorch nn.Embedding would raise); padded rows reuse id 0 and their
    # logits are sliced off by the wrapper.
    row = lax.broadcasted_iota(jnp.int32, (n_rows, tb), 0)
    twohot = jnp.logical_or(row == uid, row == mid).astype(jnp.bfloat16)

    # Fused gather + fc1 (single MXU pass), f32 accumulation.
    h_t = jnp.dot(wf_ref[...], twohot,
                  preferred_element_type=jnp.float32) + b1_ref[...]   # (H, TB)
    h_t = jnp.maximum(h_t, 0.0)                                       # ReLU
    # TODO(synk): nn.Dropout(0.3) is train-time only; inference forward is identity.

    # fc2 feature-major -> lane-dense (1, TB) block.
    logit = (jnp.dot(w2_ref[...], h_t.astype(jnp.bfloat16),
                     preferred_element_type=jnp.float32) + b2_ref[...])
    out_ref[...] = logit.astype(out_ref.dtype)


def _vmem_capacity_bytes():
    try:
        return int(pltpu.get_tpu_info().vmem_capacity_bytes)
    except Exception:
        return 64 * 1024 * 1024          # v7x-safe lower bound


def _resident_spec(block_shape):
    """Grid-invariant operand: resident in VMEM, single-buffered if supported."""
    try:
        return pl.BlockSpec(block_shape, lambda i: (0, 0),
                            pipeline_mode=pl.Buffered(1))
    except (TypeError, AttributeError):
        return pl.BlockSpec(block_shape, lambda i: (0, 0))


def _choose_tile(batch, hidden_dim, n_rows):
    """Pick a batch tile (multiple of 128) and a scoped VMEM limit for this chip."""
    vmem_cap = _vmem_capacity_bytes()
    vmem_limit = vmem_cap * 3 // 4          # 96 MiB on v5e/v6e, 48 MiB on v7x
    # Single-buffered resident operands: bf16 fused table + small vectors.
    resident = 2 * hidden_dim * n_rows + 4 * hidden_dim + 2 * hidden_dim + 4
    # Per-batch-column cost of one tile:
    #   double-buffered IO: 2 int32 ids + 1 f32 logit       -> 12 B x 2
    #   in-kernel temporaries: int32 iota + bf16 two-hot over n_rows,
    #   f32 h_t + bf16 h cast over hidden_dim, small slack.
    per_col = 24 + 6 * n_rows + 6 * hidden_dim + 16
    budget = int(vmem_limit * 0.85) - resident
    tb = (budget // per_col) // 128 * 128
    tb = max(128, min(32768, tb))
    return tb, vmem_limit


def two_tower_forward(user_ids, movie_ids, params, tile_batch=None):
    """TwoTowerMLPModel forward. Returns logits of shape (B,)."""
    user_emb = params["user_embedding"]              # (U, E)
    movie_emb = params["movie_embedding"]            # (M, E)
    fc1_w, fc1_b = params["fc1_w"], params["fc1_b"]  # (H, 2E), (H,)
    fc2_w, fc2_b = params["fc2_w"], params["fc2_b"]  # (1, H), (1,)

    n_user_rows, E = user_emb.shape
    n_movie_rows, _ = movie_emb.shape
    n_rows = n_user_rows + n_movie_rows
    H = fc1_w.shape[0]
    B = int(user_ids.shape[0])

    # --- tile selection (chip-aware, 128-quantized) ------------------------
    tb, vmem_limit = _choose_tile(B, H, n_rows)
    if tile_batch is not None:
        # Manual override: enforce the 128-lane multiple so the BlockSpec is legal.
        tb = max(128, (int(tile_batch) + 127) // 128 * 128)
    b128 = pl.cdiv(B, 128) * 128
    tb = min(tb, b128)
    # v7x megacore: keep the "parallel" batch axis at >= 2 grid steps when possible
    # so both TensorCores get work (harmless on v5e/v6e).
    if pl.cdiv(B, tb) < 2 and b128 >= 256:
        tb = max(128, (b128 // 2) // 128 * 128)
    grid = pl.cdiv(B, tb)
    b_pad = grid * tb

    # --- batch-tiled id inputs (padded rows use id 0; logits dropped) ------
    uid = jnp.pad(user_ids.astype(jnp.int32), (0, b_pad - B)).reshape(1, b_pad)
    mid = jnp.pad(movie_ids.astype(jnp.int32), (0, b_pad - B)).reshape(1, b_pad)

    # --- one-time fc1/embedding fusion + bf16 relayout ----------------------
    # (In production these would be precomputed once, not per forward call.)
    hu = jnp.dot(fc1_w[:, :E], user_emb.T)           # (H, U) f32
    hm = jnp.dot(fc1_w[:, E:], movie_emb.T)          # (H, M) f32
    wf = jnp.concatenate([hu, hm], axis=1).astype(jnp.bfloat16)   # (H, U+M)
    b1c = fc1_b.reshape(H, 1).astype(jnp.float32)
    w2 = fc2_w.astype(jnp.bfloat16)                   # (1, H)
    b2c = fc2_b.reshape(1, 1).astype(jnp.float32)
    # TODO(synk): for production-sized tables that do not fit VMEM, keep the
    # fused table at memory_space=pl.ANY and DMA-gather rows per tile using
    # scalar-prefetched ids (PrefetchScalarGridSpec) instead of the two-hot matmul.

    out = pl.pallas_call(
        functools.partial(_two_tower_kernel, n_user_rows),
        out_shape=jax.ShapeDtypeStruct((1, b_pad), jnp.float32),
        grid_spec=pl.GridSpec(
            grid=(grid,),
            in_specs=[
                pl.BlockSpec((1, tb), lambda i: (0, i)),   # user ids
                pl.BlockSpec((1, tb), lambda i: (0, i)),   # movie ids
                _resident_spec((H, n_rows)),               # fused fc1+emb table (bf16)
                _resident_spec((H, 1)),                    # b1
                _resident_spec((1, H)),                    # w2 (bf16)
                _resident_spec((1, 1)),                    # b2
            ],
            out_specs=pl.BlockSpec((1, tb), lambda i: (0, i)),   # lane-dense logits
        ),
        compiler_params=pltpu.CompilerParams(
            dimension_semantics=("parallel",),   # independent batch tiles (v7x: 2 TCs)
            vmem_limit_bytes=vmem_limit,
        ),
    )(uid, mid, wf, b1c, w2, b2c)

    return out[0, :B]


def init_params(key, num_users, num_movies, embedding_dim=32, hidden_dim=64):
    """Deterministic parameter init mirroring the PyTorch module's shapes/layouts."""
    k_ue, k_me, k_w1, k_b1, k_w2, k_b2 = jax.random.split(key, 6)
    in1 = embedding_dim * 2
    bound1 = 1.0 / jnp.sqrt(in1)
    bound2 = 1.0 / jnp.sqrt(hidden_dim)
    return {
        # nn.Embedding default init: N(0, 1)
        "user_embedding": jax.random.normal(
            k_ue, (num_users + 1, embedding_dim), jnp.float32),
        "movie_embedding": jax.random.normal(
            k_me, (num_movies + 1, embedding_dim), jnp.float32),
        # nn.Linear native layout: weight (out, in), bias (out,)
        "fc1_w": jax.random.uniform(
            k_w1, (hidden_dim, in1), jnp.float32, -bound1, bound1),
        "fc1_b": jax.random.uniform(
            k_b1, (hidden_dim,), jnp.float32, -bound1, bound1),
        "fc2_w": jax.random.uniform(
            k_w2, (1, hidden_dim), jnp.float32, -bound2, bound2),
        "fc2_b": jax.random.uniform(
            k_b2, (1,), jnp.float32, -bound2, bound2),
    }


if __name__ == "__main__":
    num_users, num_movies = 50, 100
    embedding_dim, hidden_dim = 32, 64
    batch = 8

    key = jax.random.PRNGKey(0)
    k_params, k_uid, k_mid = jax.random.split(key, 3)

    params = init_params(k_params, num_users, num_movies,
                         embedding_dim, hidden_dim)

    user_ids = jax.random.randint(k_uid, (batch,), 0, num_users + 1, jnp.int32)
    movie_ids = jax.random.randint(k_mid, (batch,), 0, num_movies + 1, jnp.int32)

    logits = two_tower_forward(user_ids, movie_ids, params)
    jax.block_until_ready(logits)

    # Pure-JAX fp32 reference of the same math (PyTorch layouts).
    uv = jnp.take(params["user_embedding"], user_ids, axis=0)
    mv = jnp.take(params["movie_embedding"], movie_ids, axis=0)
    x = jnp.concatenate([uv, mv], axis=1)
    h = jnp.maximum(x @ params["fc1_w"].T + params["fc1_b"], 0.0)
    ref = (h @ params["fc2_w"].T + params["fc2_b"])[:, 0]

    assert logits.shape == (batch,)
    # Tolerance accounts for the intentional bf16 MXU operands (f32 accumulation).
    assert jnp.allclose(logits, ref, atol=3e-2, rtol=3e-2), \
        float(jnp.max(jnp.abs(logits - ref)))

    print("KERNEL_OK")
</pallas_src>

<mosaic_0001>
module attributes {stable_mosaic.version = 11 : i64} {
  func.func @_two_tower_kernel(%arg0: i32, %arg1: memref<1x128xi32, #tpu.memory_space<vmem>>, %arg2: memref<1x128xi32, #tpu.memory_space<vmem>>, %arg3: memref<64x152xbf16, #tpu.memory_space<vmem>>, %arg4: memref<64x1xf32, #tpu.memory_space<vmem>>, %arg5: memref<1x64xbf16, #tpu.memory_space<vmem>>, %arg6: memref<1x1xf32, #tpu.memory_space<vmem>>, %arg7: memref<1x128xf32, #tpu.memory_space<vmem>>) attributes {dimension_semantics = [#tpu.dimension_semantics<parallel>], iteration_bounds = array<i64: 1>, scalar_prefetch = 0 : i64, scratch_operands = 0 : i64, tpu.core_type = #tpu.core_type<tc>, window_params = [{transform_indices = @transform_0, window_bounds = array<i64: 1, 128>}, {transform_indices = @transform_1, window_bounds = array<i64: 1, 128>}, {pipeline_mode = #tpu.pipeline_mode<synchronous>, transform_indices = @transform_2, window_bounds = array<i64: 64, 152>}, {pipeline_mode = #tpu.pipeline_mode<synchronous>, transform_indices = @transform_3, window_bounds = array<i64: 64, 1>}, {pipeline_mode = #tpu.pipeline_mode<synchronous>, transform_indices = @transform_4, window_bounds = array<i64: 1, 64>}, {pipeline_mode = #tpu.pipeline_mode<synchronous>, transform_indices = @transform_5, window_bounds = array<i64: 1, 1>}, {transform_indices = @transform_6, window_bounds = array<i64: 1, 128>}]} {
    %c0 = arith.constant 0 : index
    %c0_0 = arith.constant 0 : index
    %0 = vector.load %arg1[%c0, %c0_0] : memref<1x128xi32, #tpu.memory_space<vmem>>, vector<1x128xi32>
    %c0_1 = arith.constant 0 : index
    %c0_2 = arith.constant 0 : index
    %1 = vector.load %arg2[%c0_1, %c0_2] : memref<1x128xi32, #tpu.memory_space<vmem>>, vector<1x128xi32>
    %c51_i32 = arith.constant 51 : i32
    %2 = vector.broadcast %c51_i32 : i32 to vector<1x128xi32>
    %3 = arith.addi %1, %2 : vector<1x128xi32>
    %4 = tpu.iota {dimensions = array<i32: 0>} : vector<152x128xi32>
    %5 = vector.broadcast %0 : vector<1x128xi32> to vector<152x128xi32>
    %6 = arith.cmpi eq, %4, %5 : vector<152x128xi32>
    %7 = vector.broadcast %3 : vector<1x128xi32> to vector<152x128xi32>
    %8 = arith.cmpi eq, %4, %7 : vector<152x128xi32>
    %9 = arith.ori %6, %8 : vector<152x128xi1>
    %10 = arith.extui %9 : vector<152x128xi1> to vector<152x128xi32>
    %11 = arith.sitofp %10 : vector<152x128xi32> to vector<152x128xf32>
    %12 = arith.truncf %11 : vector<152x128xf32> to vector<152x128xbf16>
    %c0_3 = arith.constant 0 : index
    %c0_4 = arith.constant 0 : index
    %13 = vector.load %arg3[%c0_3, %c0_4] : memref<64x152xbf16, #tpu.memory_space<vmem>>, vector<64x152xbf16>
    %cst = arith.constant dense<0.000000e+00> : vector<64x128xf32>
    %14 = tpu.matmul %13, %12, %cst {dimension_numbers = #tpu.dot_dimension_numbers<[1], [0], [0], [1], [0, 0, 1, 1], [], []>} : vector<64x152xbf16>, vector<152x128xbf16>, vector<64x128xf32> -> vector<64x128xf32>
    %c0_5 = arith.constant 0 : index
    %c0_6 = arith.constant 0 : index
    %15 = vector.load %arg4[%c0_5, %c0_6] : memref<64x1xf32, #tpu.memory_space<vmem>>, vector<64x1xf32>
    %16 = vector.broadcast %15 : vector<64x1xf32> to vector<64x128xf32>
    %17 = arith.addf %14, %16 : vector<64x128xf32>
    %cst_7 = arith.constant 0.000000e+00 : f32
    %18 = vector.broadcast %cst_7 : f32 to vector<64x128xf32>
    %19 = arith.maximumf %17, %18 : vector<64x128xf32>
    %c0_8 = arith.constant 0 : index
    %c0_9 = arith.constant 0 : index
    %20 = vector.load %arg5[%c0_8, %c0_9] : memref<1x64xbf16, #tpu.memory_space<vmem>>, vector<1x64xbf16>
    %21 = arith.truncf %19 : vector<64x128xf32> to vector<64x128xbf16>
    %cst_10 = arith.constant dense<0.000000e+00> : vector<1x128xf32>
    %22 = tpu.matmul %20, %21, %cst_10 {dimension_numbers = #tpu.dot_dimension_numbers<[1], [0], [0], [1], [0, 0, 1, 1], [], []>} : vector<1x64xbf16>, vector<64x128xbf16>, vector<1x128xf32> -> vector<1x128xf32>
    %c0_11 = arith.constant 0 : index
    %c0_12 = arith.constant 0 : index
    %23 = vector.load %arg6[%c0_11, %c0_12] : memref<1x1xf32, #tpu.memory_space<vmem>>, vector<1x1xf32>
    %24 = vector.broadcast %23 : vector<1x1xf32> to vector<1x128xf32>
    %25 = arith.addf %22, %24 : vector<1x128xf32>
    %c0_13 = arith.constant 0 : index
    %c0_14 = arith.constant 0 : index
    %26 = vector.load %arg7[%c0_13, %c0_14] : memref<1x128xf32, #tpu.memory_space<vmem>>, vector<1x128xf32>
    tpu.vector_store %arg7[%c0_13, %c0_14], %25 {strides = array<i32>} : memref<1x128xf32, #tpu.memory_space<vmem>>, vector<1x128xf32>,
    return
  }
  func.func @transform_0(%arg0: i32) -> (i32, i32) {
    %c0_i32 = arith.constant 0 : i32
    %c0_i32_0 = arith.constant 0 : i32
    return %c0_i32, %arg0 : i32, i32
  }
  func.func @transform_1(%arg0: i32) -> (i32, i32) {
    %c0_i32 = arith.constant 0 : i32
    %c0_i32_0 = arith.constant 0 : i32
    return %c0_i32, %arg0 : i32, i32
  }
  func.func @transform_2(%arg0: i32) -> (i32, i32) {
    %c0_i32 = arith.constant 0 : i32
    %c0_i32_0 = arith.constant 0 : i32
    %c0_i32_1 = arith.constant 0 : i32
    return %c0_i32, %c0_i32_0 : i32, i32
  }
  func.func @transform_3(%arg0: i32) -> (i32, i32) {
    %c0_i32 = arith.constant 0 : i32
    %c0_i32_0 = arith.constant 0 : i32
    %c0_i32_1 = arith.constant 0 : i32
    return %c0_i32, %c0_i32_0 : i32, i32
  }
  func.func @transform_4(%arg0: i32) -> (i32, i32) {
    %c0_i32 = arith.constant 0 : i32
    %c0_i32_0 = arith.constant 0 : i32
    %c0_i32_1 = arith.constant 0 : i32
    return %c0_i32, %c0_i32_0 : i32, i32
  }
  func.func @transform_5(%arg0: i32) -> (i32, i32) {
    %c0_i32 = arith.constant 0 : i32
    %c0_i32_0 = arith.constant 0 : i32
    %c0_i32_1 = arith.constant 0 : i32
    return %c0_i32, %c0_i32_0 : i32, i32
  }
  func.func @transform_6(%arg0: i32) -> (i32, i32) {
    %c0_i32 = arith.constant 0 : i32
    %c0_i32_0 = arith.constant 0 : i32
    return %c0_i32, %arg0 : i32, i32
  }
}

</mosaic_0001>

<llo_original>
// kernel: tpu_custom_call.1
$region0: #{tpu_custom_call.1}
  #allocation0 [shape = 'u32[]', space=smem, size = 0x4, offset = 0x4, fixed_abs, tag = 'smem constant byte address 0x4 - core index']
  #allocation1 [shape = 'u32[144,128]{1,0:T(1,128)}', space=vmem, size = 0x12000, scoped, tag = 'internal scratch']
  #allocation2 [shape = 'f32[1,1]{1,0:T(1,128)S(1)}', space=vmem, size = 0x200, scoped, tag = 'scoped memory for tpu_custom_call.1']
  %s0 = inlined_call_operand.vmem [shape: s32[1,128], index: 0, kind: input, shape index: {}]
  %s1 = inlined_call_operand.vmem [shape: s32[1,128], index: 1, kind: input, shape index: {}]
  %s2 = inlined_call_operand.vmem [shape: bf16[64,152], index: 2, kind: input, shape index: {}]
  %s3 = inlined_call_operand.vmem [shape: f32[64,1], index: 3, kind: input, shape index: {}]
  %s4 = inlined_call_operand.vmem [shape: bf16[1,64], index: 4, kind: input, shape index: {}]
  %s5 = inlined_call_operand.<no memory space> [shape: f32[1,1], index: 5, kind: input, shape index: {}]
  %s6 = inlined_call_operand.hbm [shape: f32[1,128], index: 6, kind: output, shape index: {}]
  %s7 = sld [smem:[#allocation0]]
  $region34: #{tpu_custom_call.1} parent=0
    _
  %s9 = ssub.s32 1, %s7
  %s10 = scalar_select 0, %s9, %s7
  %v11 = vstv %s5
  %12 = vst [vmem:[#allocation2] sm:$0x1] %v11
  $region1: #{tpu_custom_call.1} parent=0
    #allocation3 [shape = 'u8[512]{0}', space=vmem, size = 0x400, scoped, tag = 'output window, operand 0, single buffered']
    #allocation4 [shape = 's32[1]{0}', space=sflag, size = 0x4, scoped, tag = 'scoped memory for tpu_custom_call.1']
    %13 = vsyncpa [#allocation4], 0
    // Predicated region
    $region2: #{tpu_custom_call.1} parent=1 // pred_check
      _
    $region3: #{tpu_custom_call.1} parent=1 // pred_check_branch
      %15 = sbr.rel (0) target = $region5
    $region4: #{tpu_custom_call.1} parent=1 // pred_region
      _
    $region5: #{tpu_custom_call.1} parent=1 // pred_fallthru
      _
    // Predicated region
    $region6: #{tpu_custom_call.1} parent=1 // pred_check
      _
    $region7: #{tpu_custom_call.1} parent=1 // pred_check_branch
      %17 = sbr.rel (0) target = $region9
    $region8: #{tpu_custom_call.1} parent=1 // pred_region
      _
    $region9: #{tpu_custom_call.1} parent=1 // pred_fallthru
      _
    // Predicated region
    $region10: #{tpu_custom_call.1} parent=1 // pred_check
      _
    $region11: #{tpu_custom_call.1} parent=1 // pred_check_branch
      %19 = sbr.rel (0) target = $region13
    $region12: #{tpu_custom_call.1} parent=1 // pred_region
      _
    $region13: #{tpu_custom_call.1} parent=1 // pred_fallthru
      _
    // Predicated region
    $region14: #{tpu_custom_call.1} parent=1 // pred_check
      _
    $region15: #{tpu_custom_call.1} parent=1 // pred_check_branch
      %21 = sbr.rel (0) target = $region17
    $region16: #{tpu_custom_call.1} parent=1 // pred_region
      _
    $region17: #{tpu_custom_call.1} parent=1 // pred_fallthru
      _
    // Predicated region
    $region18: #{tpu_custom_call.1} parent=1 // pred_check
      _
    $region19: #{tpu_custom_call.1} parent=1 // pred_check_branch
      %23 = sbr.rel (0) target = $region21
    $region20: #{tpu_custom_call.1} parent=1 // pred_region
      _
    $region21: #{tpu_custom_call.1} parent=1 // pred_fallthru
      _
    // Predicated region
    $region22: #{tpu_custom_call.1} parent=1 // pred_check
      _
    $region23: #{tpu_custom_call.1} parent=1 // pred_check_branch
      %25 = sbr.rel (0) target = $region25
    $region24: #{tpu_custom_call.1} parent=1 // pred_region
      _
    $region25: #{tpu_custom_call.1} parent=1 // pred_fallthru
      _
    %v27 = vld [vmem:[%s0] sm:$0x1]
    %v28 = vld [vmem:[%s1] sm:$0x1]
    %v29 = vadd.s32 %v28, 51
    %v30 = vlaneseq
    %v31 = vshrl.u32 %v30, 7
    %v32 = vadd.s32 %v31, 8
    %v33 = vadd.s32 %v31, 16
    %v34 = vadd.s32 %v31, 24
    %v35 = vadd.s32 %v31, 32
    %v36 = vadd.s32 %v31, 40
    %v37 = vadd.s32 %v31, 48
    %v38 = vadd.s32 %v31, 56
    %v39 = vadd.s32 %v31, 64
    %v40 = vadd.s32 %v31, 72
    %v41 = vadd.s32 %v31, 80
    %v42 = vadd.s32 %v31, 88
    %v43 = vadd.s32 %v31, 96
    %v44 = vadd.s32 %v31, 104
    %v45 = vadd.s32 %v31, 112
    %v46 = vadd.s32 %v31, 120
    %v47 = vadd.s32 %v31, 128
    %v48 = vadd.s32 %v31, 136
    %v49 = vadd.s32 %v31, 144
    %v50 = vlaneseq
    %v51 = vshrl.u32 %v50, 7
    %v52 = vsub.s32 0, %v51
    %v53 = vrot.slane %v27, %v52
    %vm54 = vcmp.eq.s32.totalorder %v31, %v53
    %vm55 = vcmp.eq.s32.totalorder %v32, %v53
    %vm56 = vcmp.eq.s32.totalorder %v33, %v53
    %vm57 = vcmp.eq.s32.totalorder %v34, %v53
    %vm58 = vcmp.eq.s32.totalorder %v35, %v53
    %vm59 = vcmp.eq.s32.totalorder %v36, %v53
    %vm60 = vcmp.eq.s32.totalorder %v37, %v53
    %vm61 = vcmp.eq.s32.totalorder %v38, %v53
    %vm62 = vcmp.eq.s32.totalorder %v39, %v53
    %vm63 = vcmp.eq.s32.totalorder %v40, %v53
    %vm64 = vcmp.eq.s32.totalorder %v41, %v53
    %vm65 = vcmp.eq.s32.totalorder %v42, %v53
    %vm66 = vcmp.eq.s32.totalorder %v43, %v53
    %vm67 = vcmp.eq.s32.totalorder %v44, %v53
    %vm68 = vcmp.eq.s32.totalorder %v45, %v53
    %vm69 = vcmp.eq.s32.totalorder %v46, %v53
    %vm70 = vcmp.eq.s32.totalorder %v47, %v53
    %vm71 = vcmp.eq.s32.totalorder %v48, %v53
    %vm72 = vcmp.eq.s32.totalorder %v49, %v53
    %v73 = vlaneseq
    %v74 = vshrl.u32 %v73, 7
    %v75 = vsub.s32 0, %v74
    %v76 = vrot.slane %v29, %v75
    %vm77 = vcmp.eq.s32.totalorder %v31, %v76
    %vm78 = vcmp.eq.s32.totalorder %v32, %v76
    %vm79 = vcmp.eq.s32.totalorder %v33, %v76
    %vm80 = vcmp.eq.s32.totalorder %v34, %v76
    %vm81 = vcmp.eq.s32.totalorder %v35, %v76
    %vm82 = vcmp.eq.s32.totalorder %v36, %v76
    %vm83 = vcmp.eq.s32.totalorder %v37, %v76
    %vm84 = vcmp.eq.s32.totalorder %v38, %v76
    %vm85 = vcmp.eq.s32.totalorder %v39, %v76
    %vm86 = vcmp.eq.s32.totalorder %v40, %v76
    %vm87 = vcmp.eq.s32.totalorder %v41, %v76
    %vm88 = vcmp.eq.s32.totalorder %v42, %v76
    %vm89 = vcmp.eq.s32.totalorder %v43, %v76
    %vm90 = vcmp.eq.s32.totalorder %v44, %v76
    %vm91 = vcmp.eq.s32.totalorder %v45, %v76
    %vm92 = vcmp.eq.s32.totalorder %v46, %v76
    %vm93 = vcmp.eq.s32.totalorder %v47, %v76
    %vm94 = vcmp.eq.s32.totalorder %v48, %v76
    %vm95 = vcmp.eq.s32.totalorder %v49, %v76
    %vm96 = vmor %vm54, %vm77
    %vm97 = vmor %vm55, %vm78
    %vm98 = vmor %vm56, %vm79
    %vm99 = vmor %vm57, %vm80
    %vm100 = vmor %vm58, %vm81
    %vm101 = vmor %vm59, %vm82
    %vm102 = vmor %vm60, %vm83
    %vm103 = vmor %vm61, %vm84
    %vm104 = vmor %vm62, %vm85
    %vm105 = vmor %vm63, %vm86
    %vm106 = vmor %vm64, %vm87
    %vm107 = vmor %vm65, %vm88
    %vm108 = vmor %vm66, %vm89
    %vm109 = vmor %vm67, %vm90
    %vm110 = vmor %vm68, %vm91
    %vm111 = vmor %vm69, %vm92
    %vm112 = vmor %vm70, %vm93
    %vm113 = vmor %vm71, %vm94
    %vm114 = vmor %vm72, %vm95
    %v115 = vsel %vm96, 1, 0
    %v116 = vsel %vm97, 1, 0
    %v117 = vsel %vm98, 1, 0
    %v118 = vsel %vm99, 1, 0
    %v119 = vsel %vm100, 1, 0
    %v120 = vsel %vm101, 1, 0
    %v121 = vsel %vm102, 1, 0
    %v122 = vsel %vm103, 1, 0
    %v123 = vsel %vm104, 1, 0
    %v124 = vsel %vm105, 1, 0
    %v125 = vsel %vm106, 1, 0
    %v126 = vsel %vm107, 1, 0
    %v127 = vsel %vm108, 1, 0
    %v128 = vsel %vm109, 1, 0
    %v129 = vsel %vm110, 1, 0
    %v130 = vsel %vm111, 1, 0
    %v131 = vsel %vm112, 1, 0
    %v132 = vsel %vm113, 1, 0
    %v133 = vsel %vm114, 1, 0
    %v134 = vcvt.s32.f32 %v115
    %v135 = vcvt.s32.f32 %v116
    %v136 = vcvt.s32.f32 %v117
    %v137 = vcvt.s32.f32 %v118
    %v138 = vcvt.s32.f32 %v119
    %v139 = vcvt.s32.f32 %v120
    %v140 = vcvt.s32.f32 %v121
    %v141 = vcvt.s32.f32 %v122
    %v142 = vcvt.s32.f32 %v123
    %v143 = vcvt.s32.f32 %v124
    %v144 = vcvt.s32.f32 %v125
    %v145 = vcvt.s32.f32 %v126
    %v146 = vcvt.s32.f32 %v127
    %v147 = vcvt.s32.f32 %v128
    %v148 = vcvt.s32.f32 %v129
    %v149 = vcvt.s32.f32 %v130
    %v150 = vcvt.s32.f32 %v131
    %v151 = vcvt.s32.f32 %v132
    %v152 = vcvt.s32.f32 %v133
    %v153 = vpack.c.bf16 %v135, %v134
    %v154 = vpack.c.bf16 %v137, %v136
    %v155 = vpack.c.bf16 %v139, %v138
    %v156 = vpack.c.bf16 %v141, %v140
    %v157 = vpack.c.bf16 %v143, %v142
    %v158 = vpack.c.bf16 %v145, %v144
    %v159 = vpack.c.bf16 %v147, %v146
    %v160 = vpack.c.bf16 %v149, %v148
    %v161 = vpack.c.bf16 %v151, %v150
    %v162 = vpack.c.bf16 %v152, %v152
    %v163 = vld [vmem:[%s2] sm:$0xff]
    %v164 = vld [vmem:[%s2 + $0x8] sm:$0xff]
    %v165 = vld [vmem:[%s2 + $0x10] sm:$0xff]
    %v166 = vld [vmem:[%s2 + $0x18] sm:$0xff]
    %v167 = vld [vmem:[%s2 + $0x20] sm:$0xff]
    %v168 = vld [vmem:[%s2 + $0x28] sm:$0xff]
    %v169 = vld [vmem:[%s2 + $0x30] sm:$0xff]
    %v170 = vld [vmem:[%s2 + $0x38] sm:$0xff]
    %v171 = vld [vmem:[%s3] sm:$0xff]
    %v172 = vld [vmem:[%s3 + $0x8] sm:$0xff]
    %v173 = vld [vmem:[%s3 + $0x10] sm:$0xff]
    %v174 = vld [vmem:[%s3 + $0x18] sm:$0xff]
    %v175 = vld [vmem:[%s3 + $0x20] sm:$0xff]
    %v176 = vld [vmem:[%s3 + $0x28] sm:$0xff]
    %v177 = vld [vmem:[%s3 + $0x30] sm:$0xff]
    %v178 = vld [vmem:[%s3 + $0x38] sm:$0xff]
    %180 = vset.pattern.permute.xlu0 0
    %181 = vperm.xlu0 %180, %v171
    %v182 = vpop.permute.xlu0 %181
    %185 = vset.pattern.permute.xlu0 0
    %186 = vperm.xlu0 %185, %v172
    %v187 = vpop.permute.xlu0 %186
    %190 = vset.pattern.permute.xlu0 0
    %191 = vperm.xlu0 %190, %v173
    %v192 = vpop.permute.xlu0 %191
    %195 = vset.pattern.permute.xlu0 0
    %196 = vperm.xlu0 %195, %v174
    %v197 = vpop.permute.xlu0 %196
    %200 = vset.pattern.permute.xlu0 0
    %201 = vperm.xlu0 %200, %v175
    %v202 = vpop.permute.xlu0 %201
    %205 = vset.pattern.permute.xlu0 0
    %206 = vperm.xlu0 %205, %v176
    %v207 = vpop.permute.xlu0 %206
    %210 = vset.pattern.permute.xlu0 0
    %211 = vperm.xlu0 %210, %v177
    %v212 = vpop.permute.xlu0 %211
    %215 = vset.pattern.permute.xlu0 0
    %216 = vperm.xlu0 %215, %v178
    %v217 = vpop.permute.xlu0 %216
    %v227 = vunpack.c.l.b16 %v163
    %v228 = vunpack.c.h.b16 %v163
    %v229 = vunpack.c.l.b16 %v164
    %v230 = vunpack.c.h.b16 %v164
    %v231 = vunpack.c.l.b16 %v165
    %v232 = vunpack.c.h.b16 %v165
    %v233 = vunpack.c.l.b16 %v166
    %v234 = vunpack.c.h.b16 %v166
    %v235 = vunpack.c.l.b16 %v167
    %v236 = vunpack.c.h.b16 %v167
    %v237 = vunpack.c.l.b16 %v168
    %v238 = vunpack.c.h.b16 %v168
    %v239 = vunpack.c.l.b16 %v169
    %v240 = vunpack.c.h.b16 %v169
    %v241 = vunpack.c.l.b16 %v170
    %v242 = vunpack.c.h.b16 %v170
    %v243 = vpack.c.b16 %v229, %v227
    %v244 = vpack.c.b16 %v230, %v228
    %v245 = vpack.c.b16 %v233, %v231
    %v246 = vpack.c.b16 %v234, %v232
    %v247 = vpack.c.b16 %v237, %v235
    %v248 = vpack.c.b16 %v238, %v236
    %v249 = vpack.c.b16 %v241, %v239
    %v250 = vpack.c.b16 %v242, %v240
    %vm255 = vcmask 195584
    %v257 = vsel %vm255, %v244, 0
    %v260 = vsel %vm255, %v246, 0
    %v263 = vsel %vm255, %v248, 0
    %v266 = vsel %vm255, %v250, 0
    %vm268 = vcmask 1043456
    %v270 = vsel %vm268, %v162, 0
    %272 = vmatprep.subr.bf16.mxu0 0
    %273 = vmatpush1.bf16.msra.mxu0 %v160
    %274 = vmatprep.subr.bf16.mxu0 0
    %275 = vmatpush1.bf16.msra.mxu0 %v159
    %276 = vmatprep.subr.bf16.mxu0 0
    %277 = vmatpush1.bf16.msra.mxu0 %v158
    %278 = vmatprep.subr.bf16.mxu0 0
    %279 = vmatpush1.bf16.msra.mxu0 %v157
    %280 = vmatprep.subr.bf16.mxu0 0
    %281 = vmatpush1.bf16.msra.mxu0 %v156
    %282 = vmatprep.subr.bf16.mxu0 0
    %283 = vmatpush1.bf16.msra.mxu0 %v155
    %284 = vmatprep.subr.bf16.mxu0 0
    %285 = vmatpush1.bf16.msra.mxu0 %v154
    %286 = vmatprep.subr.bf16.mxu0 0
    %287 = vmatpush1.bf16.msra.mxu0 %v153
    %288 = vmatprep.subr.bf16.mxu0 0
    %289 = vmatpush2.bf16.msra.mxu0 0
    %290 = vmatprep.subr.bf16.mxu0 0
    %291 = vmatpush2.bf16.msra.mxu0 0
    %292 = vmatprep.subr.bf16.mxu0 0
    %293 = vmatpush2.bf16.msra.mxu0 0
    %294 = vmatprep.subr.bf16.mxu0 0
    %295 = vmatpush2.bf16.msra.mxu0 0
    %296 = vmatprep.subr.bf16.mxu0 0
    %297 = vmatpush2.bf16.msra.mxu0 0
    %298 = vmatprep.subr.bf16.mxu0 0
    %299 = vmatpush2.bf16.msra.mxu0 0
    %300 = vmatprep.subr.bf16.mxu0 0
    %301 = vmatpush2.bf16.msra.mxu0 %v270
    %302 = vmatprep.subr.bf16.mxu0 0
    %303 = vmatpush2.bf16.msra.mxu0 %v161
    %304 = vmatprep.mubr.bf16.mxu0 %v257
    %305 = vmatmul.mubr.bf16.gmra.mxu0 %v243
    %v306 = vpop.f32.mrf.mxu0
    %v307 = vadd.f32 %v182, %v306
    %v308 = vpop.f32.mrf.mxu0
    %v309 = vpop.f32.mrf.mxu0
    %v310 = vadd.f32 %v187, %v309
    %v311 = vpop.f32.mrf.mxu0
    %312 = vmatprep.mubr.bf16.mxu0 %v260
    %313 = vmatmul.mubr.bf16.gmra.mxu0 %v245
    %v314 = vpop.f32.mrf.mxu0
    %v315 = vadd.f32 %v192, %v314
    %v316 = vpop.f32.mrf.mxu0
    %v317 = vpop.f32.mrf.mxu0
    %v318 = vadd.f32 %v197, %v317
    %v319 = vpop.f32.mrf.mxu0
    %320 = vmatprep.mubr.bf16.mxu0 %v263
    %321 = vmatmul.mubr.bf16.gmra.mxu0 %v247
    %v322 = vpop.f32.mrf.mxu0
    %v323 = vadd.f32 %v202, %v322
    %v324 = vpop.f32.mrf.mxu0
    %v325 = vpop.f32.mrf.mxu0
    %v326 = vadd.f32 %v207, %v325
    %v327 = vpop.f32.mrf.mxu0
    %328 = vmatprep.mubr.bf16.mxu0 %v266
    %329 = vmatmul.mubr.bf16.gmra.mxu0 %v249
    %v330 = vpop.f32.mrf.mxu0
    %v331 = vadd.f32 %v212, %v330
    %v332 = vpop.f32.mrf.mxu0
    %v333 = vpop.f32.mrf.mxu0
    %v334 = vadd.f32 %v217, %v333
    %v335 = vpop.f32.mrf.mxu0
    %336 = vdwg.mxu0
    %v337 = vmax.f32 %v307, 0.0
    %v338 = vmax.f32 %v310, 0.0
    %v339 = vmax.f32 %v315, 0.0
    %v340 = vmax.f32 %v318, 0.0
    %v341 = vmax.f32 %v323, 0.0
    %v342 = vmax.f32 %v326, 0.0
    %v343 = vmax.f32 %v331, 0.0
    %v344 = vmax.f32 %v334, 0.0
    %v345 = vld [vmem:[%s4] sm:$0x1]
    %v346 = vpack.c.bf16 %v338, %v337
    %v347 = vpack.c.bf16 %v340, %v339
    %v348 = vpack.c.bf16 %v342, %v341
    %v349 = vpack.c.bf16 %v344, %v343
    %v350 = vld [vmem:[#allocation2] sm:$0x1]
    %352 = vset.pattern.permute.xlu0 0
    %353 = vperm.xlu0 %352, %v350
    %v354 = vpop.permute.xlu0 %353
    %v356 = vlaneseq
    %v357 = vshrl.u32 %v356, 7
    %v358 = vsub.s32 0, %v357
    %v359 = vrot.slane %v354, %v358
    %vm360 = vcmask 523264
    %v362 = vsel %vm360, %v345, 0
    %364 = vmatprep.subr.bf16.mxu0 0
    %365 = vmatpush1.bf16.msra.mxu0 0
    %366 = vmatprep.subr.bf16.mxu0 0
    %367 = vmatpush1.bf16.msra.mxu0 0
    %368 = vmatprep.subr.bf16.mxu0 0
    %369 = vmatpush1.bf16.msra.mxu0 0
    %370 = vmatprep.subr.bf16.mxu0 0
    %371 = vmatpush1.bf16.msra.mxu0 0
    %372 = vmatprep.subr.bf16.mxu0 0
    %373 = vmatpush1.bf16.msra.mxu0 %v349
    %374 = vmatprep.subr.bf16.mxu0 0
    %375 = vmatpush1.bf16.msra.mxu0 %v348
    %376 = vmatprep.subr.bf16.mxu0 0
    %377 = vmatpush1.bf16.msra.mxu0 %v347
    %378 = vmatprep.subr.bf16.mxu0 0
    %379 = vmatpush1.bf16.msra.mxu0 %v346
    %380 = vmatprep.subr.bf16.mxu0 0
    %381 = vmatpush2.bf16.msra.mxu0 0
    %382 = vmatprep.subr.bf16.mxu0 0
    %383 = vmatpush2.bf16.msra.mxu0 0
    %384 = vmatprep.subr.bf16.mxu0 0
    %385 = vmatpush2.bf16.msra.mxu0 0
    %386 = vmatprep.subr.bf16.mxu0 0
    %387 = vmatpush2.bf16.msra.mxu0 0
    %388 = vmatprep.subr.bf16.mxu0 0
    %389 = vmatpush2.bf16.msra.mxu0 0
    %390 = vmatprep.subr.bf16.mxu0 0
    %391 = vmatpush2.bf16.msra.mxu0 0
    %392 = vmatprep.subr.bf16.mxu0 0
    %393 = vmatpush2.bf16.msra.mxu0 0
    %394 = vmatprep.subr.bf16.mxu0 0
    %395 = vmatpush2.bf16.msra.mxu0 0
    %396 = vmatprep.mubr.bf16.mxu0 0
    %397 = vmatmul.mubr.bf16.gmra.mxu0 %v362
    %v398 = vpop.f32.mrf.mxu0
    %v399 = vadd.f32 %v359, %v398
    %v400 = vpop.f32.mrf.mxu0
    %v401 = vpop.f32.mrf.mxu0
    %v402 = vpop.f32.mrf.mxu0
    %403 = vdwg.mxu0
    %404 = vst [vmem:[#allocation3] sm:$0x1] %v399
    // Predicated region
    $region26: #{tpu_custom_call.1} parent=1 // pred_check
      _
    $region27: #{tpu_custom_call.1} parent=1 // pred_check_branch
      %406 = sbr.rel (0) target = $region29
    $region28: #{tpu_custom_call.1} parent=1 // pred_region
      %s408 = ssub.s32 16, 16
      %409 = vsyncadd [#allocation4], %s408
      %s411 = sshll.u32 [#allocation3], 4
      %s412 = int_to_ptr.vmem [resolvable:$true] %s411
      %414 = dma.vmem_to_hbm [thread:$0]  %s412, 16, %s6, [#allocation4]
    $region29: #{tpu_custom_call.1} parent=1 // pred_fallthru
      _
    // Predicated region
    $region30: #{tpu_custom_call.1} parent=1 // pred_check
      _
    $region31: #{tpu_custom_call.1} parent=1 // pred_check_branch
      %416 = sbr.rel (0) target = $region33
    $region32: #{tpu_custom_call.1} parent=1 // pred_region
      %417 = dma.done [#allocation4], 16
    $region33: #{tpu_custom_call.1} parent=1 // pred_fallthru
      _
    %418 = vsyncpa [#allocation4], 1

</llo_original>
